<compile_context>
chip_gen: v7x
topology: tpu7x:2x2x1
jax: 0.10.0
libtpu: 0.0.40
codegen_flags: <defaults>
</compile_context>

<pallas_src>
import functools

import jax
import jax.numpy as jnp
from jax import lax
from jax.experimental import pallas as pl
from jax.experimental.pallas import tpu as pltpu


def _value_mlp_kernel(x_ref, *refs, n_layers: int):
    """refs = (W1, b1, W2, b2, ..., Wn, bn, out_ref).

    Hidden weights are (out, in); the final weight is passed as a (hidden, 1)
    column; biases are (out, 1).  Activations are feature-major (features, tb)
    so the batch sits on the lane axis and the (1, tb) result is lane-dense.
    """
    out_ref = refs[-1]
    p = refs[:-1]
    f32 = jnp.float32

    # Layer 0: contract x's feature axis directly (x stays batch-major in
    # VMEM; the MXU consumes it transposed) -> (hidden, tb), batch on lanes.
    x = x_ref[...]
    w0 = p[0][...]
    z = lax.dot_general(
        w0, x.astype(w0.dtype),
        dimension_numbers=(((1,), (1,)), ((), ())),
        preferred_element_type=f32)
    ht = jnp.maximum(z + p[1][...].astype(f32), 0.0)            # (hidden, tb) f32

    # Hidden layers: (out, in) @ (in, tb) MXU matmuls with f32 accumulation.
    for li in range(1, n_layers - 1):
        w = p[2 * li][...]
        b = p[2 * li + 1][...].astype(f32)
        z = jnp.dot(w, ht.astype(w.dtype), preferred_element_type=f32)
        ht = jnp.maximum(z + b, 0.0)

    # Final hidden -> 1 layer: VPU multiply + sublane reduce (no N=1 matmul),
    # result is already lane-dense.  Final ReLU matches ValueMLP semantics.
    w_col = p[2 * (n_layers - 1)][...].astype(f32)              # (hidden, 1)
    b_out = p[2 * (n_layers - 1) + 1][...].astype(f32)          # (1, 1)
    v = jnp.sum(ht * w_col, axis=0, keepdims=True) + b_out      # (1, tb)
    out_ref[...] = jnp.maximum(v, 0.0).astype(out_ref.dtype)


def _default_batch_tile(B):
    # Batch maps to the output lane axis, so a tile must be the full batch or a
    # multiple of 128 lanes.  Aim for >= 4 grid steps (DMA/compute overlap and
    # megacore sharding on v7x) while keeping (hidden, tb) f32 activations well
    # inside the vreg file.
    if B < 512:
        return B
    for tb in (512, 256, 128):
        if B // tb >= 4:
            return tb
    return 128


def _build_call(x, kernel_params, *, tb, n_layers, single_buffer_weights):
    B, state_dim = x.shape
    itemsize = jnp.dtype(x.dtype).itemsize

    if single_buffer_weights:
        def wspec(shape):
            # Constant index map -> fetch once, keep resident, single buffer.
            return pl.BlockSpec(shape, lambda i: (0, 0),
                                pipeline_mode=pl.Buffered(buffer_count=1))
    else:
        def wspec(shape):
            return pl.BlockSpec(shape, lambda i: (0, 0))

    in_specs = [pl.BlockSpec((tb, state_dim), lambda i: (i, 0))]
    in_specs += [wspec(a.shape) for a in kernel_params]
    out_spec = pl.BlockSpec((1, tb), lambda i: (0, i))   # lane-dense output rows

    # Advisory cost estimate so XLA schedules around this tiny, latency-bound call.
    param_bytes = sum(a.size * jnp.dtype(a.dtype).itemsize for a in kernel_params)
    flops = sum(2 * B * kernel_params[2 * li].shape[0] * kernel_params[2 * li].shape[1]
                for li in range(n_layers))
    cost = pl.CostEstimate(
        flops=flops, transcendentals=0,
        bytes_accessed=x.size * itemsize + param_bytes + B * itemsize)

    # Explicit VMEM budget: resident params + double-buffered x/out streams,
    # with headroom, clamped so the same spec also fits v7x's 64 MiB VMEM.
    w_bufs = 1 if single_buffer_weights else 2
    stream_bytes = 2 * (tb * state_dim + tb) * itemsize
    vmem_limit = int(1.5 * (w_bufs * param_bytes + stream_bytes)) + (8 << 20)
    vmem_limit = max(16 << 20, min(vmem_limit, 64 << 20))

    return pl.pallas_call(
        functools.partial(_value_mlp_kernel, n_layers=n_layers),
        out_shape=jax.ShapeDtypeStruct((1, B), x.dtype),
        grid_spec=pltpu.PrefetchScalarGridSpec(
            num_scalar_prefetch=0,
            grid=(pl.cdiv(B, tb),),
            in_specs=in_specs,
            out_specs=out_spec,
        ),
        compiler_params=pltpu.CompilerParams(
            dimension_semantics=("parallel",),
            vmem_limit_bytes=vmem_limit,
        ),
        cost_estimate=cost,
    )


def value_mlp_forward(x, params, *, batch_tile=None):
    """x: (B, state_dim).  params: list of (W, b) in PyTorch nn.Linear layout,
    i.e. W is (out_features, in_features), b is (out_features,).  Returns (B, 1)."""
    B, state_dim = x.shape
    n_layers = len(params)
    if n_layers < 2:
        raise ValueError("ValueMLP requires depth >= 1 (i.e. >= 2 linear layers).")
    if params[-1][0].shape[0] != 1:
        raise ValueError("final layer must have output dim 1")

    tb = _default_batch_tile(B) if batch_tile is None else min(int(batch_tile), B)
    if not (tb == B or (tb > 0 and tb % 128 == 0)):
        raise ValueError(
            f"batch_tile={tb} must equal the batch ({B}) or be a multiple of 128 "
            "(batch maps to the lane axis of the output).")

    # Repack params for the kernel: biases as (out, 1) columns (lane broadcast),
    # final weight as a (hidden, 1) column for the VPU reduction head.  These
    # reshapes are tiny wrapper-side XLA ops.
    kernel_params = []
    for li, (w, b) in enumerate(params):
        if li == n_layers - 1:
            w = w.reshape(w.shape[1], 1)
        kernel_params.append(w)
        kernel_params.append(b.reshape(-1, 1))

    def _run(single_buffer_weights):
        call = _build_call(x, kernel_params, tb=tb, n_layers=n_layers,
                           single_buffer_weights=single_buffer_weights)
        return call(x, *kernel_params)

    try:
        out = _run(True)
    except Exception:
        # pl.Buffered(1) resident weights not supported by this JAX/Mosaic build:
        # fall back to default double-buffered weight specs (still correct).
        out = _run(False)

    return out.reshape(B, 1)


def init_value_mlp_params(key, state_dim, hidden_dim, depth):
    """Layer shapes match ValueMLP: Linear(state->hidden), (depth-1) x
    Linear(hidden->hidden), Linear(hidden->1).  Weights in torch (out, in) layout."""
    dims = [state_dim] + [hidden_dim] * depth + [1]
    params = []
    for i in range(len(dims) - 1):
        key, kw, kb = jax.random.split(key, 3)
        bound = 1.0 / (dims[i] ** 0.5)  # mirrors torch.nn.Linear default init range
        w = jax.random.uniform(kw, (dims[i + 1], dims[i]), jnp.float32, -bound, bound)
        b = jax.random.uniform(kb, (dims[i + 1],), jnp.float32, -bound, bound)
        params.append((w, b))
    return params


def value_mlp_reference(x, params):
    h = x
    for (w, b) in params:
        h = jnp.maximum(h @ w.T + b, 0.0)   # ReLU after every layer incl. the last
    return h


if __name__ == "__main__":
    state_dim, hidden_dim, depth = 32, 32, 2

    key = jax.random.PRNGKey(0)
    key, kx = jax.random.split(key)
    params = init_value_mlp_params(key, state_dim, hidden_dim, depth)

    # Small single-tile case.
    batch = 8
    x = jax.random.normal(kx, (batch, state_dim), jnp.float32)
    out = jax.block_until_ready(value_mlp_forward(x, params))
    ref = value_mlp_reference(x, params)
    assert out.shape == (batch, 1), out.shape
    assert jnp.allclose(out, ref, atol=2e-5, rtol=1e-5), (out, ref)

    # Larger batch exercising the tiled / pipelined / lane-dense path (grid = 4).
    key, kb = jax.random.split(key)
    big_batch = 512
    xb = jax.random.normal(kb, (big_batch, state_dim), jnp.float32)
    out_b = jax.block_until_ready(value_mlp_forward(xb, params))
    ref_b = value_mlp_reference(xb, params)
    assert out_b.shape == (big_batch, 1), out_b.shape
    assert jnp.allclose(out_b, ref_b, atol=2e-5, rtol=1e-5)

    print("KERNEL_OK")
</pallas_src>

<mosaic_0001>
module attributes {stable_mosaic.version = 11 : i64} {
  func.func @_value_mlp_kernel(%arg0: i32, %arg1: memref<8x32xf32, #tpu.memory_space<vmem>>, %arg2: memref<32x32xf32, #tpu.memory_space<vmem>>, %arg3: memref<32x1xf32, #tpu.memory_space<vmem>>, %arg4: memref<32x32xf32, #tpu.memory_space<vmem>>, %arg5: memref<32x1xf32, #tpu.memory_space<vmem>>, %arg6: memref<32x1xf32, #tpu.memory_space<vmem>>, %arg7: memref<1x1xf32, #tpu.memory_space<vmem>>, %arg8: memref<1x8xf32, #tpu.memory_space<vmem>>) attributes {dimension_semantics = [#tpu.dimension_semantics<parallel>], iteration_bounds = array<i64: 1>, scalar_prefetch = 0 : i64, scratch_operands = 0 : i64, tpu.core_type = #tpu.core_type<tc>, window_params = [{transform_indices = @transform_0, window_bounds = array<i64: 8, 32>}, {pipeline_mode = #tpu.pipeline_mode<synchronous>, transform_indices = @transform_1, window_bounds = array<i64: 32, 32>}, {pipeline_mode = #tpu.pipeline_mode<synchronous>, transform_indices = @transform_2, window_bounds = array<i64: 32, 1>}, {pipeline_mode = #tpu.pipeline_mode<synchronous>, transform_indices = @transform_3, window_bounds = array<i64: 32, 32>}, {pipeline_mode = #tpu.pipeline_mode<synchronous>, transform_indices = @transform_4, window_bounds = array<i64: 32, 1>}, {pipeline_mode = #tpu.pipeline_mode<synchronous>, transform_indices = @transform_5, window_bounds = array<i64: 32, 1>}, {pipeline_mode = #tpu.pipeline_mode<synchronous>, transform_indices = @transform_6, window_bounds = array<i64: 1, 1>}, {transform_indices = @transform_7, window_bounds = array<i64: 1, 8>}]} {
    %c0 = arith.constant 0 : index
    %c0_0 = arith.constant 0 : index
    %0 = vector.load %arg1[%c0, %c0_0] : memref<8x32xf32, #tpu.memory_space<vmem>>, vector<8x32xf32>
    %c0_1 = arith.constant 0 : index
    %c0_2 = arith.constant 0 : index
    %1 = vector.load %arg2[%c0_1, %c0_2] : memref<32x32xf32, #tpu.memory_space<vmem>>, vector<32x32xf32>
    %cst = arith.constant dense<0.000000e+00> : vector<32x8xf32>
    %2 = tpu.matmul %1, %0, %cst {dimension_numbers = #tpu.dot_dimension_numbers<[1], [1], [0], [0], [0, 0, 1, 0], [], []>} : vector<32x32xf32>, vector<8x32xf32>, vector<32x8xf32> -> vector<32x8xf32>
    %c0_3 = arith.constant 0 : index
    %c0_4 = arith.constant 0 : index
    %3 = vector.load %arg3[%c0_3, %c0_4] : memref<32x1xf32, #tpu.memory_space<vmem>>, vector<32x1xf32>
    %4 = vector.broadcast %3 : vector<32x1xf32> to vector<32x8xf32>
    %5 = arith.addf %2, %4 : vector<32x8xf32>
    %cst_5 = arith.constant 0.000000e+00 : f32
    %6 = vector.broadcast %cst_5 : f32 to vector<32x8xf32>
    %7 = arith.maximumf %5, %6 : vector<32x8xf32>
    %c0_6 = arith.constant 0 : index
    %c0_7 = arith.constant 0 : index
    %8 = vector.load %arg4[%c0_6, %c0_7] : memref<32x32xf32, #tpu.memory_space<vmem>>, vector<32x32xf32>
    %c0_8 = arith.constant 0 : index
    %c0_9 = arith.constant 0 : index
    %9 = vector.load %arg5[%c0_8, %c0_9] : memref<32x1xf32, #tpu.memory_space<vmem>>, vector<32x1xf32>
    %cst_10 = arith.constant dense<0.000000e+00> : vector<32x8xf32>
    %10 = tpu.matmul %8, %7, %cst_10 {dimension_numbers = #tpu.dot_dimension_numbers<[1], [0], [0], [1], [0, 0, 1, 1], [], []>} : vector<32x32xf32>, vector<32x8xf32>, vector<32x8xf32> -> vector<32x8xf32>
    %11 = vector.broadcast %9 : vector<32x1xf32> to vector<32x8xf32>
    %12 = arith.addf %10, %11 : vector<32x8xf32>
    %cst_11 = arith.constant 0.000000e+00 : f32
    %13 = vector.broadcast %cst_11 : f32 to vector<32x8xf32>
    %14 = arith.maximumf %12, %13 : vector<32x8xf32>
    %c0_12 = arith.constant 0 : index
    %c0_13 = arith.constant 0 : index
    %15 = vector.load %arg6[%c0_12, %c0_13] : memref<32x1xf32, #tpu.memory_space<vmem>>, vector<32x1xf32>
    %c0_14 = arith.constant 0 : index
    %c0_15 = arith.constant 0 : index
    %16 = vector.load %arg7[%c0_14, %c0_15] : memref<1x1xf32, #tpu.memory_space<vmem>>, vector<1x1xf32>
    %17 = vector.broadcast %15 : vector<32x1xf32> to vector<32x8xf32>
    %18 = arith.mulf %14, %17 : vector<32x8xf32>
    %cst_16 = arith.constant dense<0.000000e+00> : vector<8xf32>
    %19 = vector.multi_reduction <add>, %18, %cst_16 [0] : vector<32x8xf32> to vector<8xf32>
    %20 = vector.shape_cast %19 : vector<8xf32> to vector<1x8xf32>
    %21 = vector.broadcast %16 : vector<1x1xf32> to vector<1x8xf32>
    %22 = arith.addf %20, %21 : vector<1x8xf32>
    %cst_17 = arith.constant 0.000000e+00 : f32
    %23 = vector.broadcast %cst_17 : f32 to vector<1x8xf32>
    %24 = arith.maximumf %22, %23 : vector<1x8xf32>
    %c0_18 = arith.constant 0 : index
    %c0_19 = arith.constant 0 : index
    %25 = vector.load %arg8[%c0_18, %c0_19] : memref<1x8xf32, #tpu.memory_space<vmem>>, vector<1x8xf32>
    tpu.vector_store %arg8[%c0_18, %c0_19], %24 {strides = array<i32>} : memref<1x8xf32, #tpu.memory_space<vmem>>, vector<1x8xf32>,
    return
  }
  func.func @transform_0(%arg0: i32) -> (i32, i32) {
    %c0_i32 = arith.constant 0 : i32
    %c0_i32_0 = arith.constant 0 : i32
    return %arg0, %c0_i32 : i32, i32
  }
  func.func @transform_1(%arg0: i32) -> (i32, i32) {
    %c0_i32 = arith.constant 0 : i32
    %c0_i32_0 = arith.constant 0 : i32
    %c0_i32_1 = arith.constant 0 : i32
    return %c0_i32, %c0_i32_0 : i32, i32
  }
  func.func @transform_2(%arg0: i32) -> (i32, i32) {
    %c0_i32 = arith.constant 0 : i32
    %c0_i32_0 = arith.constant 0 : i32
    %c0_i32_1 = arith.constant 0 : i32
    return %c0_i32, %c0_i32_0 : i32, i32
  }
  func.func @transform_3(%arg0: i32) -> (i32, i32) {
    %c0_i32 = arith.constant 0 : i32
    %c0_i32_0 = arith.constant 0 : i32
    %c0_i32_1 = arith.constant 0 : i32
    return %c0_i32, %c0_i32_0 : i32, i32
  }
  func.func @transform_4(%arg0: i32) -> (i32, i32) {
    %c0_i32 = arith.constant 0 : i32
    %c0_i32_0 = arith.constant 0 : i32
    %c0_i32_1 = arith.constant 0 : i32
    return %c0_i32, %c0_i32_0 : i32, i32
  }
  func.func @transform_5(%arg0: i32) -> (i32, i32) {
    %c0_i32 = arith.constant 0 : i32
    %c0_i32_0 = arith.constant 0 : i32
    %c0_i32_1 = arith.constant 0 : i32
    return %c0_i32, %c0_i32_0 : i32, i32
  }
  func.func @transform_6(%arg0: i32) -> (i32, i32) {
    %c0_i32 = arith.constant 0 : i32
    %c0_i32_0 = arith.constant 0 : i32
    %c0_i32_1 = arith.constant 0 : i32
    return %c0_i32, %c0_i32_0 : i32, i32
  }
  func.func @transform_7(%arg0: i32) -> (i32, i32) {
    %c0_i32 = arith.constant 0 : i32
    %c0_i32_0 = arith.constant 0 : i32
    return %c0_i32, %arg0 : i32, i32
  }
}

module attributes {stable_mosaic.version = 11 : i64} {
  func.func @_value_mlp_kernel(%arg0: i32, %arg1: memref<8x32xf32, #tpu.memory_space<vmem>>, %arg2: memref<32x32xf32, #tpu.memory_space<vmem>>, %arg3: memref<32x1xf32, #tpu.memory_space<vmem>>, %arg4: memref<32x32xf32, #tpu.memory_space<vmem>>, %arg5: memref<32x1xf32, #tpu.memory_space<vmem>>, %arg6: memref<32x1xf32, #tpu.memory_space<vmem>>, %arg7: memref<1x1xf32, #tpu.memory_space<vmem>>, %arg8: memref<1x8xf32, #tpu.memory_space<vmem>>) attributes {dimension_semantics = [#tpu.dimension_semantics<parallel>], iteration_bounds = array<i64: 1>, scalar_prefetch = 0 : i64, scratch_operands = 0 : i64, tpu.core_type = #tpu.core_type<tc>, window_params = [{transform_indices = @transform_0, window_bounds = array<i64: 8, 32>}, {pipeline_mode = #tpu.pipeline_mode<synchronous>, transform_indices = @transform_1, window_bounds = array<i64: 32, 32>}, {pipeline_mode = #tpu.pipeline_mode<synchronous>, transform_indices = @transform_2, window_bounds = array<i64: 32, 1>}, {pipeline_mode = #tpu.pipeline_mode<synchronous>, transform_indices = @transform_3, window_bounds = array<i64: 32, 32>}, {pipeline_mode = #tpu.pipeline_mode<synchronous>, transform_indices = @transform_4, window_bounds = array<i64: 32, 1>}, {pipeline_mode = #tpu.pipeline_mode<synchronous>, transform_indices = @transform_5, window_bounds = array<i64: 32, 1>}, {pipeline_mode = #tpu.pipeline_mode<synchronous>, transform_indices = @transform_6, window_bounds = array<i64: 1, 1>}, {transform_indices = @transform_7, window_bounds = array<i64: 1, 8>}]} {
    %c0 = arith.constant 0 : index
    %c0_0 = arith.constant 0 : index
    %0 = vector.load %arg1[%c0, %c0_0] : memref<8x32xf32, #tpu.memory_space<vmem>>, vector<8x32xf32>
    %c0_1 = arith.constant 0 : index
    %c0_2 = arith.constant 0 : index
    %1 = vector.load %arg2[%c0_1, %c0_2] : memref<32x32xf32, #tpu.memory_space<vmem>>, vector<32x32xf32>
    %cst = arith.constant dense<0.000000e+00> : vector<32x8xf32>
    %2 = tpu.matmul %1, %0, %cst {dimension_numbers = #tpu.dot_dimension_numbers<[1], [1], [0], [0], [0, 0, 1, 0], [], []>} : vector<32x32xf32>, vector<8x32xf32>, vector<32x8xf32> -> vector<32x8xf32>
    %c0_3 = arith.constant 0 : index
    %c0_4 = arith.constant 0 : index
    %3 = vector.load %arg3[%c0_3, %c0_4] : memref<32x1xf32, #tpu.memory_space<vmem>>, vector<32x1xf32>
    %4 = vector.broadcast %3 : vector<32x1xf32> to vector<32x8xf32>
    %5 = arith.addf %2, %4 : vector<32x8xf32>
    %cst_5 = arith.constant 0.000000e+00 : f32
    %6 = vector.broadcast %cst_5 : f32 to vector<32x8xf32>
    %7 = arith.maximumf %5, %6 : vector<32x8xf32>
    %c0_6 = arith.constant 0 : index
    %c0_7 = arith.constant 0 : index
    %8 = vector.load %arg4[%c0_6, %c0_7] : memref<32x32xf32, #tpu.memory_space<vmem>>, vector<32x32xf32>
    %c0_8 = arith.constant 0 : index
    %c0_9 = arith.constant 0 : index
    %9 = vector.load %arg5[%c0_8, %c0_9] : memref<32x1xf32, #tpu.memory_space<vmem>>, vector<32x1xf32>
    %cst_10 = arith.constant dense<0.000000e+00> : vector<32x8xf32>
    %10 = tpu.matmul %8, %7, %cst_10 {dimension_numbers = #tpu.dot_dimension_numbers<[1], [0], [0], [1], [0, 0, 1, 1], [], []>} : vector<32x32xf32>, vector<32x8xf32>, vector<32x8xf32> -> vector<32x8xf32>
    %11 = vector.broadcast %9 : vector<32x1xf32> to vector<32x8xf32>
    %12 = arith.addf %10, %11 : vector<32x8xf32>
    %cst_11 = arith.constant 0.000000e+00 : f32
    %13 = vector.broadcast %cst_11 : f32 to vector<32x8xf32>
    %14 = arith.maximumf %12, %13 : vector<32x8xf32>
    %c0_12 = arith.constant 0 : index
    %c0_13 = arith.constant 0 : index
    %15 = vector.load %arg6[%c0_12, %c0_13] : memref<32x1xf32, #tpu.memory_space<vmem>>, vector<32x1xf32>
    %c0_14 = arith.constant 0 : index
    %c0_15 = arith.constant 0 : index
    %16 = vector.load %arg7[%c0_14, %c0_15] : memref<1x1xf32, #tpu.memory_space<vmem>>, vector<1x1xf32>
    %17 = vector.broadcast %15 : vector<32x1xf32> to vector<32x8xf32>
    %18 = arith.mulf %14, %17 : vector<32x8xf32>
    %cst_16 = arith.constant dense<0.000000e+00> : vector<8xf32>
    %19 = vector.multi_reduction <add>, %18, %cst_16 [0] : vector<32x8xf32> to vector<8xf32>
    %20 = vector.shape_cast %19 : vector<8xf32> to vector<1x8xf32>
    %21 = vector.broadcast %16 : vector<1x1xf32> to vector<1x8xf32>
    %22 = arith.addf %20, %21 : vector<1x8xf32>
    %cst_17 = arith.constant 0.000000e+00 : f32
    %23 = vector.broadcast %cst_17 : f32 to vector<1x8xf32>
    %24 = arith.maximumf %22, %23 : vector<1x8xf32>
    %c0_18 = arith.constant 0 : index
    %c0_19 = arith.constant 0 : index
    %25 = vector.load %arg8[%c0_18, %c0_19] : memref<1x8xf32, #tpu.memory_space<vmem>>, vector<1x8xf32>
    tpu.vector_store %arg8[%c0_18, %c0_19], %24 {strides = array<i32>} : memref<1x8xf32, #tpu.memory_space<vmem>>, vector<1x8xf32>,
    return
  }
  func.func @transform_0(%arg0: i32) -> (i32, i32) {
    %c0_i32 = arith.constant 0 : i32
    %c0_i32_0 = arith.constant 0 : i32
    return %arg0, %c0_i32 : i32, i32
  }
  func.func @transform_1(%arg0: i32) -> (i32, i32) {
    %c0_i32 = arith.constant 0 : i32
    %c0_i32_0 = arith.constant 0 : i32
    %c0_i32_1 = arith.constant 0 : i32
    return %c0_i32, %c0_i32_0 : i32, i32
  }
  func.func @transform_2(%arg0: i32) -> (i32, i32) {
    %c0_i32 = arith.constant 0 : i32
    %c0_i32_0 = arith.constant 0 : i32
    %c0_i32_1 = arith.constant 0 : i32
    return %c0_i32, %c0_i32_0 : i32, i32
  }
  func.func @transform_3(%arg0: i32) -> (i32, i32) {
    %c0_i32 = arith.constant 0 : i32
    %c0_i32_0 = arith.constant 0 : i32
    %c0_i32_1 = arith.constant 0 : i32
    return %c0_i32, %c0_i32_0 : i32, i32
  }
  func.func @transform_4(%arg0: i32) -> (i32, i32) {
    %c0_i32 = arith.constant 0 : i32
    %c0_i32_0 = arith.constant 0 : i32
    %c0_i32_1 = arith.constant 0 : i32
    return %c0_i32, %c0_i32_0 : i32, i32
  }
  func.func @transform_5(%arg0: i32) -> (i32, i32) {
    %c0_i32 = arith.constant 0 : i32
    %c0_i32_0 = arith.constant 0 : i32
    %c0_i32_1 = arith.constant 0 : i32
    return %c0_i32, %c0_i32_0 : i32, i32
  }
  func.func @transform_6(%arg0: i32) -> (i32, i32) {
    %c0_i32 = arith.constant 0 : i32
    %c0_i32_0 = arith.constant 0 : i32
    %c0_i32_1 = arith.constant 0 : i32
    return %c0_i32, %c0_i32_0 : i32, i32
  }
  func.func @transform_7(%arg0: i32) -> (i32, i32) {
    %c0_i32 = arith.constant 0 : i32
    %c0_i32_0 = arith.constant 0 : i32
    return %c0_i32, %arg0 : i32, i32
  }
}

</mosaic_0001>

<llo_original>
// kernel: tpu_custom_call.1
$region0: #{tpu_custom_call.1}
  #allocation0 [shape = 'u32[]', space=smem, size = 0x4, offset = 0x4, fixed_abs, tag = 'smem constant byte address 0x4 - core index']
  #allocation1 [shape = 'u32[144,128]{1,0:T(1,128)}', space=vmem, size = 0x12000, scoped, tag = 'internal scratch']
  #allocation2 [shape = 'f32[1,1]{1,0:T(1,128)S(1)}', space=vmem, size = 0x200, scoped, tag = 'scoped memory for tpu_custom_call.1']
  %s0 = inlined_call_operand.vmem [shape: f32[8,32], index: 0, kind: input, shape index: {}]
  %s1 = inlined_call_operand.vmem [shape: f32[32,32], index: 1, kind: input, shape index: {}]
  %s2 = inlined_call_operand.vmem [shape: f32[32,1], index: 2, kind: input, shape index: {}]
  %s3 = inlined_call_operand.vmem [shape: f32[32,32], index: 3, kind: input, shape index: {}]
  %s4 = inlined_call_operand.vmem [shape: f32[32,1], index: 4, kind: input, shape index: {}]
  %s5 = inlined_call_operand.vmem [shape: f32[32,1], index: 5, kind: input, shape index: {}]
  %s6 = inlined_call_operand.<no memory space> [shape: f32[1,1], index: 6, kind: input, shape index: {}]
  %s7 = inlined_call_operand.hbm [shape: f32[1,8], index: 7, kind: output, shape index: {}]
  %s8 = sld [smem:[#allocation0]]
  $region38: #{tpu_custom_call.1} parent=0
    _
  %s10 = ssub.s32 1, %s8
  %s11 = scalar_select 0, %s10, %s8
  %v12 = vstv %s6
  %13 = vst [vmem:[#allocation2] sm:$0x1] %v12
  $region1: #{tpu_custom_call.1} parent=0
    #allocation3 [shape = 'u8[512]{0}', space=vmem, size = 0x400, scoped, tag = 'output window, operand 0, single buffered']
    #allocation4 [shape = 's32[1]{0}', space=sflag, size = 0x4, scoped, tag = 'scoped memory for tpu_custom_call.1']
    %14 = vsyncpa [#allocation4], 0
    // Predicated region
    $region2: #{tpu_custom_call.1} parent=1 // pred_check
      _
    $region3: #{tpu_custom_call.1} parent=1 // pred_check_branch
      %16 = sbr.rel (0) target = $region5
    $region4: #{tpu_custom_call.1} parent=1 // pred_region
      _
    $region5: #{tpu_custom_call.1} parent=1 // pred_fallthru
      _
    // Predicated region
    $region6: #{tpu_custom_call.1} parent=1 // pred_check
      _
    $region7: #{tpu_custom_call.1} parent=1 // pred_check_branch
      %18 = sbr.rel (0) target = $region9
    $region8: #{tpu_custom_call.1} parent=1 // pred_region
      _
    $region9: #{tpu_custom_call.1} parent=1 // pred_fallthru
      _
    // Predicated region
    $region10: #{tpu_custom_call.1} parent=1 // pred_check
      _
    $region11: #{tpu_custom_call.1} parent=1 // pred_check_branch
      %20 = sbr.rel (0) target = $region13
    $region12: #{tpu_custom_call.1} parent=1 // pred_region
      _
    $region13: #{tpu_custom_call.1} parent=1 // pred_fallthru
      _
    // Predicated region
    $region14: #{tpu_custom_call.1} parent=1 // pred_check
      _
    $region15: #{tpu_custom_call.1} parent=1 // pred_check_branch
      %22 = sbr.rel (0) target = $region17
    $region16: #{tpu_custom_call.1} parent=1 // pred_region
      _
    $region17: #{tpu_custom_call.1} parent=1 // pred_fallthru
      _
    // Predicated region
    $region18: #{tpu_custom_call.1} parent=1 // pred_check
      _
    $region19: #{tpu_custom_call.1} parent=1 // pred_check_branch
      %24 = sbr.rel (0) target = $region21
    $region20: #{tpu_custom_call.1} parent=1 // pred_region
      _
    $region21: #{tpu_custom_call.1} parent=1 // pred_fallthru
      _
    // Predicated region
    $region22: #{tpu_custom_call.1} parent=1 // pred_check
      _
    $region23: #{tpu_custom_call.1} parent=1 // pred_check_branch
      %26 = sbr.rel (0) target = $region25
    $region24: #{tpu_custom_call.1} parent=1 // pred_region
      _
    $region25: #{tpu_custom_call.1} parent=1 // pred_fallthru
      _
    // Predicated region
    $region26: #{tpu_custom_call.1} parent=1 // pred_check
      _
    $region27: #{tpu_custom_call.1} parent=1 // pred_check_branch
      %28 = sbr.rel (0) target = $region29
    $region28: #{tpu_custom_call.1} parent=1 // pred_region
      _
    $region29: #{tpu_custom_call.1} parent=1 // pred_fallthru
      _
    %v29 = vld [vmem:[%s0] sm:$0xff]
    %v30 = vld [vmem:[%s1] sm:$0xff]
    %v31 = vld [vmem:[%s1 + $0x8] sm:$0xff]
    %v32 = vld [vmem:[%s1 + $0x10] sm:$0xff]
    %v33 = vld [vmem:[%s1 + $0x18] sm:$0xff]
    %v34 = vld [vmem:[%s2] sm:$0xff]
    %v35 = vld [vmem:[%s2 + $0x8] sm:$0xff]
    %v36 = vld [vmem:[%s2 + $0x10] sm:$0xff]
    %v37 = vld [vmem:[%s2 + $0x18] sm:$0xff]
    %39 = vset.pattern.permute.xlu0 0
    %40 = vperm.xlu0 %39, %v34
    %v41 = vpop.permute.xlu0 %40
    %44 = vset.pattern.permute.xlu0 0
    %45 = vperm.xlu0 %44, %v35
    %v46 = vpop.permute.xlu0 %45
    %49 = vset.pattern.permute.xlu0 0
    %50 = vperm.xlu0 %49, %v36
    %v51 = vpop.permute.xlu0 %50
    %54 = vset.pattern.permute.xlu0 0
    %55 = vperm.xlu0 %54, %v37
    %v56 = vpop.permute.xlu0 %55
    %vm58 = vcmask 261120
    %v60 = vsel %vm58, %v30, 0
    %v63 = vsel %vm58, %v31, 0
    %v66 = vsel %vm58, %v32, 0
    %v69 = vsel %vm58, %v33, 0
    %v72 = vsel %vm58, %v29, 0
    %74 = vmatprep.subr.mxu0 0.0
    %75 = vmatpush1.xpose.msra.mxu0 %v72
    %76 = vmatprep.subr.mxu0 0.0
    %77 = vmatpush1.xpose.msra.mxu0 0.0
    %78 = vmatprep.subr.mxu0 0.0
    %79 = vmatpush1.xpose.msra.mxu0 0.0
    %80 = vmatprep.subr.mxu0 0.0
    %81 = vmatpush1.xpose.msra.mxu0 0.0
    %82 = vmatprep.subr.mxu0 0.0
    %83 = vmatpush1.xpose.msra.mxu0 0.0
    %84 = vmatprep.subr.mxu0 0.0
    %85 = vmatpush1.xpose.msra.mxu0 0.0
    %86 = vmatprep.subr.mxu0 0.0
    %87 = vmatpush1.xpose.msra.mxu0 0.0
    %88 = vmatprep.subr.mxu0 0.0
    %89 = vmatpush1.xpose.msra.mxu0 0.0
    %90 = vmatprep.subr.mxu0 0.0
    %91 = vmatpush1.xpose.msra.mxu0 0.0
    %92 = vmatprep.subr.mxu0 0.0
    %93 = vmatpush1.xpose.msra.mxu0 0.0
    %94 = vmatprep.subr.mxu0 0.0
    %95 = vmatpush1.xpose.msra.mxu0 0.0
    %96 = vmatprep.subr.mxu0 0.0
    %97 = vmatpush1.xpose.msra.mxu0 0.0
    %98 = vmatprep.subr.mxu0 0.0
    %99 = vmatpush1.xpose.msra.mxu0 0.0
    %100 = vmatprep.subr.mxu0 0.0
    %101 = vmatpush1.xpose.msra.mxu0 0.0
    %102 = vmatprep.subr.mxu0 0.0
    %103 = vmatpush1.xpose.msra.mxu0 0.0
    %104 = vmatprep.subr.mxu0 0.0
    %105 = vmatpush1.xpose.msra.mxu0 0.0
    %106 = vmatprep.subr.mxu0 0.0
    %107 = vmatpush1.xpose.msra.mxu0 0.0
    %108 = vmatprep.subr.mxu0 0.0
    %109 = vmatpush1.xpose.msra.mxu0 0.0
    %110 = vmatprep.subr.mxu0 0.0
    %111 = vmatpush1.xpose.msra.mxu0 0.0
    %112 = vmatprep.subr.mxu0 0.0
    %113 = vmatpush1.xpose.msra.mxu0 0.0
    %114 = vmatprep.subr.mxu0 0.0
    %115 = vmatpush1.xpose.msra.mxu0 0.0
    %116 = vmatprep.subr.mxu0 0.0
    %117 = vmatpush1.xpose.msra.mxu0 0.0
    %118 = vmatprep.subr.mxu0 0.0
    %119 = vmatpush1.xpose.msra.mxu0 0.0
    %120 = vmatprep.subr.mxu0 0.0
    %121 = vmatpush1.xpose.msra.mxu0 0.0
    %122 = vmatprep.subr.mxu0 0.0
    %123 = vmatpush1.xpose.msra.mxu0 0.0
    %124 = vmatprep.subr.mxu0 0.0
    %125 = vmatpush1.xpose.msra.mxu0 0.0
    %126 = vmatprep.subr.mxu0 0.0
    %127 = vmatpush1.xpose.msra.mxu0 0.0
    %128 = vmatprep.subr.mxu0 0.0
    %129 = vmatpush1.xpose.msra.mxu0 0.0
    %130 = vmatprep.subr.mxu0 0.0
    %131 = vmatpush1.xpose.msra.mxu0 0.0
    %132 = vmatprep.subr.mxu0 0.0
    %133 = vmatpush1.xpose.msra.mxu0 0.0
    %134 = vmatprep.subr.mxu0 0.0
    %135 = vmatpush1.xpose.msra.mxu0 0.0
    %136 = vmatprep.subr.mxu0 0.0
    %137 = vmatpush1.xpose.msra.mxu0 0.0
    %138 = vmatprep.mubr.f32.mxu0 0.0
    %139 = vmatmul.mubr.f32.gmra.mrb[0].mxu0 %v60
    %v140 = vpop.f32.mrb[0].mxu0
    %v141 = vadd.f32 %v41, %v140
    %v142 = vpop.f32.mrb[0].mxu0
    %143 = vmatprep.mubr.f32.mxu0 0.0
    %144 = vmatmul.mubr.f32.gmra.mrb[0].mxu0 %v63
    %v145 = vpop.f32.mrb[0].mxu0
    %v146 = vadd.f32 %v46, %v145
    %v147 = vpop.f32.mrb[0].mxu0
    %148 = vmatprep.mubr.f32.mxu0 0.0
    %149 = vmatmul.mubr.f32.gmra.mrb[0].mxu0 %v66
    %v150 = vpop.f32.mrb[0].mxu0
    %v151 = vadd.f32 %v51, %v150
    %v152 = vpop.f32.mrb[0].mxu0
    %153 = vmatprep.mubr.f32.mxu0 0.0
    %154 = vmatmul.mubr.f32.gmra.mrb[0].mxu0 %v69
    %v155 = vpop.f32.mrb[0].mxu0
    %v156 = vadd.f32 %v56, %v155
    %v157 = vpop.f32.mrb[0].mxu0
    %158 = vdwg.mxu0
    %v159 = vmax.f32 %v141, 0.0
    %v160 = vmax.f32 %v146, 0.0
    %v161 = vmax.f32 %v151, 0.0
    %v162 = vmax.f32 %v156, 0.0
    %v163 = vld [vmem:[%s3] sm:$0xff]
    %v164 = vld [vmem:[%s3 + $0x8] sm:$0xff]
    %v165 = vld [vmem:[%s3 + $0x10] sm:$0xff]
    %v166 = vld [vmem:[%s3 + $0x18] sm:$0xff]
    %v167 = vld [vmem:[%s4] sm:$0xff]
    %v168 = vld [vmem:[%s4 + $0x8] sm:$0xff]
    %v169 = vld [vmem:[%s4 + $0x10] sm:$0xff]
    %v170 = vld [vmem:[%s4 + $0x18] sm:$0xff]
    %172 = vset.pattern.permute.xlu0 0
    %173 = vperm.xlu0 %172, %v167
    %v174 = vpop.permute.xlu0 %173
    %177 = vset.pattern.permute.xlu0 0
    %178 = vperm.xlu0 %177, %v168
    %v179 = vpop.permute.xlu0 %178
    %182 = vset.pattern.permute.xlu0 0
    %183 = vperm.xlu0 %182, %v169
    %v184 = vpop.permute.xlu0 %183
    %187 = vset.pattern.permute.xlu0 0
    %188 = vperm.xlu0 %187, %v170
    %v189 = vpop.permute.xlu0 %188
    %v192 = vsel %vm58, %v163, 0
    %v195 = vsel %vm58, %v164, 0
    %v198 = vsel %vm58, %v165, 0
    %v201 = vsel %vm58, %v166, 0
    %203 = vmatprep.subr.mxu0 0.0
    %204 = vmatpush1.msra.mxu0 %v159
    %205 = vmatprep.subr.mxu0 0.0
    %206 = vmatpush1.msra.mxu0 %v160
    %207 = vmatprep.subr.mxu0 0.0
    %208 = vmatpush1.msra.mxu0 %v161
    %209 = vmatprep.subr.mxu0 0.0
    %210 = vmatpush1.msra.mxu0 %v162
    %211 = vmatprep.subr.mxu0 0.0
    %212 = vmatpush1.msra.mxu0 0.0
    %213 = vmatprep.subr.mxu0 0.0
    %214 = vmatpush1.msra.mxu0 0.0
    %215 = vmatprep.subr.mxu0 0.0
    %216 = vmatpush1.msra.mxu0 0.0
    %217 = vmatprep.subr.mxu0 0.0
    %218 = vmatpush1.msra.mxu0 0.0
    %219 = vmatprep.subr.mxu0 0.0
    %220 = vmatpush1.msra.mxu0 0.0
    %221 = vmatprep.subr.mxu0 0.0
    %222 = vmatpush1.msra.mxu0 0.0
    %223 = vmatprep.subr.mxu0 0.0
    %224 = vmatpush1.msra.mxu0 0.0
    %225 = vmatprep.subr.mxu0 0.0
    %226 = vmatpush1.msra.mxu0 0.0
    %227 = vmatprep.subr.mxu0 0.0
    %228 = vmatpush1.msra.mxu0 0.0
    %229 = vmatprep.subr.mxu0 0.0
    %230 = vmatpush1.msra.mxu0 0.0
    %231 = vmatprep.subr.mxu0 0.0
    %232 = vmatpush1.msra.mxu0 0.0
    %233 = vmatprep.subr.mxu0 0.0
    %234 = vmatpush1.msra.mxu0 0.0
    %235 = vmatprep.subr.mxu0 0.0
    %236 = vmatpush1.msra.mxu0 0.0
    %237 = vmatprep.subr.mxu0 0.0
    %238 = vmatpush1.msra.mxu0 0.0
    %239 = vmatprep.subr.mxu0 0.0
    %240 = vmatpush1.msra.mxu0 0.0
    %241 = vmatprep.subr.mxu0 0.0
    %242 = vmatpush1.msra.mxu0 0.0
    %243 = vmatprep.subr.mxu0 0.0
    %244 = vmatpush1.msra.mxu0 0.0
    %245 = vmatprep.subr.mxu0 0.0
    %246 = vmatpush1.msra.mxu0 0.0
    %247 = vmatprep.subr.mxu0 0.0
    %248 = vmatpush1.msra.mxu0 0.0
    %249 = vmatprep.subr.mxu0 0.0
    %250 = vmatpush1.msra.mxu0 0.0
    %251 = vmatprep.subr.mxu0 0.0
    %252 = vmatpush1.msra.mxu0 0.0
    %253 = vmatprep.subr.mxu0 0.0
    %254 = vmatpush1.msra.mxu0 0.0
    %255 = vmatprep.subr.mxu0 0.0
    %256 = vmatpush1.msra.mxu0 0.0
    %257 = vmatprep.subr.mxu0 0.0
    %258 = vmatpush1.msra.mxu0 0.0
    %259 = vmatprep.subr.mxu0 0.0
    %260 = vmatpush1.msra.mxu0 0.0
    %261 = vmatprep.subr.mxu0 0.0
    %262 = vmatpush1.msra.mxu0 0.0
    %263 = vmatprep.subr.mxu0 0.0
    %264 = vmatpush1.msra.mxu0 0.0
    %265 = vmatprep.subr.mxu0 0.0
    %266 = vmatpush1.msra.mxu0 0.0
    %267 = vmatprep.mubr.f32.mxu0 0.0
    %268 = vmatmul.mubr.f32.gmra.mrb[0].mxu0 %v192
    %v269 = vpop.f32.mrb[0].mxu0
    %v270 = vadd.f32 %v174, %v269
    %v271 = vpop.f32.mrb[0].mxu0
    %272 = vmatprep.mubr.f32.mxu0 0.0
    %273 = vmatmul.mubr.f32.gmra.mrb[0].mxu0 %v195
    %v274 = vpop.f32.mrb[0].mxu0
    %v275 = vadd.f32 %v179, %v274
    %v276 = vpop.f32.mrb[0].mxu0
    %277 = vmatprep.mubr.f32.mxu0 0.0
    %278 = vmatmul.mubr.f32.gmra.mrb[0].mxu0 %v198
    %v279 = vpop.f32.mrb[0].mxu0
    %v280 = vadd.f32 %v184, %v279
    %v281 = vpop.f32.mrb[0].mxu0
    %282 = vmatprep.mubr.f32.mxu0 0.0
    %283 = vmatmul.mubr.f32.gmra.mrb[0].mxu0 %v201
    %v284 = vpop.f32.mrb[0].mxu0
    %v285 = vadd.f32 %v189, %v284
    %v286 = vpop.f32.mrb[0].mxu0
    %287 = vdwg.mxu0
    %v288 = vmax.f32 %v270, 0.0
    %v289 = vmax.f32 %v275, 0.0
    %v290 = vmax.f32 %v280, 0.0
    %v291 = vmax.f32 %v285, 0.0
    %v292 = vld [vmem:[%s5] sm:$0xff]
    %v293 = vld [vmem:[%s5 + $0x8] sm:$0xff]
    %v294 = vld [vmem:[%s5 + $0x10] sm:$0xff]
    %v295 = vld [vmem:[%s5 + $0x18] sm:$0xff]
    %v296 = vld [vmem:[#allocation2] sm:$0x1]
    %298 = vset.pattern.permute.xlu0 0
    %299 = vperm.xlu0 %298, %v292
    %v300 = vpop.permute.xlu0 %299
    %303 = vset.pattern.permute.xlu0 0
    %304 = vperm.xlu0 %303, %v293
    %v305 = vpop.permute.xlu0 %304
    %308 = vset.pattern.permute.xlu0 0
    %309 = vperm.xlu0 %308, %v294
    %v310 = vpop.permute.xlu0 %309
    %313 = vset.pattern.permute.xlu0 0
    %314 = vperm.xlu0 %313, %v295
    %v315 = vpop.permute.xlu0 %314
    %v317 = vmul.f32 %v288, %v300
    %v318 = vmul.f32 %v289, %v305
    %v319 = vmul.f32 %v290, %v310
    %v320 = vmul.f32 %v291, %v315
    %vm321 = vcmask 64512
    %v322 = vsel %vm321, %v317, 0.0
    %v323 = vsel %vm321, %v318, 0.0
    %v324 = vadd.f32 %v322, %v323
    %v325 = vsel %vm321, %v319, 0.0
    %v326 = vadd.f32 %v324, %v325
    %v327 = vsel %vm321, %v320, 0.0
    %v328 = vadd.f32 %v326, %v327
    %v329 = vrot.slane %v328, 4
    %v330 = vadd.f32 %v328, %v329
    %v331 = vrot.slane %v330, 2
    %v332 = vadd.f32 %v330, %v331
    %v333 = vrot.slane %v332, 1
    %v334 = vadd.f32 %v332, %v333
    %336 = vset.pattern.permute.xlu0 0
    %337 = vperm.xlu0 %336, %v296
    %v338 = vpop.permute.xlu0 %337
    %v340 = vlaneseq
    %v341 = vshrl.u32 %v340, 7
    %v342 = vsub.s32 0, %v341
    %v343 = vrot.slane %v338, %v342
    %v344 = vadd.f32 %v334, %v343
    %v345 = vmax.f32 %v344, 0.0
    %vm346 = vcmask 57344
    %347 = vst.msk [vmem:[#allocation3] sm:$0x1] %vm346, %v345
    // Predicated region
    $region30: #{tpu_custom_call.1} parent=1 // pred_check
      _
    $region31: #{tpu_custom_call.1} parent=1 // pred_check_branch
      %349 = sbr.rel (0) target = $region33
    $region32: #{tpu_custom_call.1} parent=1 // pred_region
      %s351 = ssub.s32 16, 16
      %352 = vsyncadd [#allocation4], %s351
      %s354 = sshll.u32 [#allocation3], 4
      %s355 = int_to_ptr.vmem [resolvable:$true] %s354
      %357 = dma.vmem_to_hbm [thread:$0]  %s355, 16, %s7, [#allocation4]
    $region33: #{tpu_custom_call.1} parent=1 // pred_fallthru
      _
    // Predicated region
    $region34: #{tpu_custom_call.1} parent=1 // pred_check
      _
    $region35: #{tpu_custom_call.1} parent=1 // pred_check_branch
      %359 = sbr.rel (0) target = $region37
    $region36: #{tpu_custom_call.1} parent=1 // pred_region
      %360 = dma.done [#allocation4], 16
    $region37: #{tpu_custom_call.1} parent=1 // pred_fallthru
      _
    %361 = vsyncpa [#allocation4], 1

// kernel: tpu_custom_call.1
$region0: #{tpu_custom_call.1}
  #allocation0 [shape = 'u32[]', space=smem, size = 0x4, offset = 0x4, fixed_abs, tag = 'smem constant byte address 0x4 - core index']
  #allocation1 [shape = 'u32[144,128]{1,0:T(1,128)}', space=vmem, size = 0x12000, scoped, tag = 'internal scratch']
  #allocation2 [shape = 'f32[1,1]{1,0:T(1,128)S(1)}', space=vmem, size = 0x200, scoped, tag = 'scoped memory for tpu_custom_call.1']
  %s0 = inlined_call_operand.vmem [shape: f32[8,32], index: 0, kind: input, shape index: {}]
  %s1 = inlined_call_operand.vmem [shape: f32[32,32], index: 1, kind: input, shape index: {}]
  %s2 = inlined_call_operand.vmem [shape: f32[32,1], index: 2, kind: input, shape index: {}]
  %s3 = inlined_call_operand.vmem [shape: f32[32,32], index: 3, kind: input, shape index: {}]
  %s4 = inlined_call_operand.vmem [shape: f32[32,1], index: 4, kind: input, shape index: {}]
  %s5 = inlined_call_operand.vmem [shape: f32[32,1], index: 5, kind: input, shape index: {}]
  %s6 = inlined_call_operand.<no memory space> [shape: f32[1,1], index: 6, kind: input, shape index: {}]
  %s7 = inlined_call_operand.hbm [shape: f32[1,8], index: 7, kind: output, shape index: {}]
  %s8 = sld [smem:[#allocation0]]
  $region38: #{tpu_custom_call.1} parent=0
    _
  %s10 = ssub.s32 1, %s8
  %s11 = scalar_select 0, %s10, %s8
  %v12 = vstv %s6
  %13 = vst [vmem:[#allocation2] sm:$0x1] %v12
  $region1: #{tpu_custom_call.1} parent=0
    #allocation3 [shape = 'u8[512]{0}', space=vmem, size = 0x400, scoped, tag = 'output window, operand 0, single buffered']
    #allocation4 [shape = 's32[1]{0}', space=sflag, size = 0x4, scoped, tag = 'scoped memory for tpu_custom_call.1']
    %14 = vsyncpa [#allocation4], 0
    // Predicated region
    $region2: #{tpu_custom_call.1} parent=1 // pred_check
      _
    $region3: #{tpu_custom_call.1} parent=1 // pred_check_branch
      %16 = sbr.rel (0) target = $region5
    $region4: #{tpu_custom_call.1} parent=1 // pred_region
      _
    $region5: #{tpu_custom_call.1} parent=1 // pred_fallthru
      _
    // Predicated region
    $region6: #{tpu_custom_call.1} parent=1 // pred_check
      _
    $region7: #{tpu_custom_call.1} parent=1 // pred_check_branch
      %18 = sbr.rel (0) target = $region9
    $region8: #{tpu_custom_call.1} parent=1 // pred_region
      _
    $region9: #{tpu_custom_call.1} parent=1 // pred_fallthru
      _
    // Predicated region
    $region10: #{tpu_custom_call.1} parent=1 // pred_check
      _
    $region11: #{tpu_custom_call.1} parent=1 // pred_check_branch
      %20 = sbr.rel (0) target = $region13
    $region12: #{tpu_custom_call.1} parent=1 // pred_region
      _
    $region13: #{tpu_custom_call.1} parent=1 // pred_fallthru
      _
    // Predicated region
    $region14: #{tpu_custom_call.1} parent=1 // pred_check
      _
    $region15: #{tpu_custom_call.1} parent=1 // pred_check_branch
      %22 = sbr.rel (0) target = $region17
    $region16: #{tpu_custom_call.1} parent=1 // pred_region
      _
    $region17: #{tpu_custom_call.1} parent=1 // pred_fallthru
      _
    // Predicated region
    $region18: #{tpu_custom_call.1} parent=1 // pred_check
      _
    $region19: #{tpu_custom_call.1} parent=1 // pred_check_branch
      %24 = sbr.rel (0) target = $region21
    $region20: #{tpu_custom_call.1} parent=1 // pred_region
      _
    $region21: #{tpu_custom_call.1} parent=1 // pred_fallthru
      _
    // Predicated region
    $region22: #{tpu_custom_call.1} parent=1 // pred_check
      _
    $region23: #{tpu_custom_call.1} parent=1 // pred_check_branch
      %26 = sbr.rel (0) target = $region25
    $region24: #{tpu_custom_call.1} parent=1 // pred_region
      _
    $region25: #{tpu_custom_call.1} parent=1 // pred_fallthru
      _
    // Predicated region
    $region26: #{tpu_custom_call.1} parent=1 // pred_check
      _
    $region27: #{tpu_custom_call.1} parent=1 // pred_check_branch
      %28 = sbr.rel (0) target = $region29
    $region28: #{tpu_custom_call.1} parent=1 // pred_region
      _
    $region29: #{tpu_custom_call.1} parent=1 // pred_fallthru
      _
    %v29 = vld [vmem:[%s0] sm:$0xff]
    %v30 = vld [vmem:[%s1] sm:$0xff]
    %v31 = vld [vmem:[%s1 + $0x8] sm:$0xff]
    %v32 = vld [vmem:[%s1 + $0x10] sm:$0xff]
    %v33 = vld [vmem:[%s1 + $0x18] sm:$0xff]
    %v34 = vld [vmem:[%s2] sm:$0xff]
    %v35 = vld [vmem:[%s2 + $0x8] sm:$0xff]
    %v36 = vld [vmem:[%s2 + $0x10] sm:$0xff]
    %v37 = vld [vmem:[%s2 + $0x18] sm:$0xff]
    %39 = vset.pattern.permute.xlu0 0
    %40 = vperm.xlu0 %39, %v34
    %v41 = vpop.permute.xlu0 %40
    %44 = vset.pattern.permute.xlu0 0
    %45 = vperm.xlu0 %44, %v35
    %v46 = vpop.permute.xlu0 %45
    %49 = vset.pattern.permute.xlu0 0
    %50 = vperm.xlu0 %49, %v36
    %v51 = vpop.permute.xlu0 %50
    %54 = vset.pattern.permute.xlu0 0
    %55 = vperm.xlu0 %54, %v37
    %v56 = vpop.permute.xlu0 %55
    %vm58 = vcmask 261120
    %v60 = vsel %vm58, %v30, 0
    %v63 = vsel %vm58, %v31, 0
    %v66 = vsel %vm58, %v32, 0
    %v69 = vsel %vm58, %v33, 0
    %v72 = vsel %vm58, %v29, 0
    %74 = vmatprep.subr.mxu0 0.0
    %75 = vmatpush1.xpose.msra.mxu0 %v72
    %76 = vmatprep.subr.mxu0 0.0
    %77 = vmatpush1.xpose.msra.mxu0 0.0
    %78 = vmatprep.subr.mxu0 0.0
    %79 = vmatpush1.xpose.msra.mxu0 0.0
    %80 = vmatprep.subr.mxu0 0.0
    %81 = vmatpush1.xpose.msra.mxu0 0.0
    %82 = vmatprep.subr.mxu0 0.0
    %83 = vmatpush1.xpose.msra.mxu0 0.0
    %84 = vmatprep.subr.mxu0 0.0
    %85 = vmatpush1.xpose.msra.mxu0 0.0
    %86 = vmatprep.subr.mxu0 0.0
    %87 = vmatpush1.xpose.msra.mxu0 0.0
    %88 = vmatprep.subr.mxu0 0.0
    %89 = vmatpush1.xpose.msra.mxu0 0.0
    %90 = vmatprep.subr.mxu0 0.0
    %91 = vmatpush1.xpose.msra.mxu0 0.0
    %92 = vmatprep.subr.mxu0 0.0
    %93 = vmatpush1.xpose.msra.mxu0 0.0
    %94 = vmatprep.subr.mxu0 0.0
    %95 = vmatpush1.xpose.msra.mxu0 0.0
    %96 = vmatprep.subr.mxu0 0.0
    %97 = vmatpush1.xpose.msra.mxu0 0.0
    %98 = vmatprep.subr.mxu0 0.0
    %99 = vmatpush1.xpose.msra.mxu0 0.0
    %100 = vmatprep.subr.mxu0 0.0
    %101 = vmatpush1.xpose.msra.mxu0 0.0
    %102 = vmatprep.subr.mxu0 0.0
    %103 = vmatpush1.xpose.msra.mxu0 0.0
    %104 = vmatprep.subr.mxu0 0.0
    %105 = vmatpush1.xpose.msra.mxu0 0.0
    %106 = vmatprep.subr.mxu0 0.0
    %107 = vmatpush1.xpose.msra.mxu0 0.0
    %108 = vmatprep.subr.mxu0 0.0
    %109 = vmatpush1.xpose.msra.mxu0 0.0
    %110 = vmatprep.subr.mxu0 0.0
    %111 = vmatpush1.xpose.msra.mxu0 0.0
    %112 = vmatprep.subr.mxu0 0.0
    %113 = vmatpush1.xpose.msra.mxu0 0.0
    %114 = vmatprep.subr.mxu0 0.0
    %115 = vmatpush1.xpose.msra.mxu0 0.0
    %116 = vmatprep.subr.mxu0 0.0
    %117 = vmatpush1.xpose.msra.mxu0 0.0
    %118 = vmatprep.subr.mxu0 0.0
    %119 = vmatpush1.xpose.msra.mxu0 0.0
    %120 = vmatprep.subr.mxu0 0.0
    %121 = vmatpush1.xpose.msra.mxu0 0.0
    %122 = vmatprep.subr.mxu0 0.0
    %123 = vmatpush1.xpose.msra.mxu0 0.0
    %124 = vmatprep.subr.mxu0 0.0
    %125 = vmatpush1.xpose.msra.mxu0 0.0
    %126 = vmatprep.subr.mxu0 0.0
    %127 = vmatpush1.xpose.msra.mxu0 0.0
    %128 = vmatprep.subr.mxu0 0.0
    %129 = vmatpush1.xpose.msra.mxu0 0.0
    %130 = vmatprep.subr.mxu0 0.0
    %131 = vmatpush1.xpose.msra.mxu0 0.0
    %132 = vmatprep.subr.mxu0 0.0
    %133 = vmatpush1.xpose.msra.mxu0 0.0
    %134 = vmatprep.subr.mxu0 0.0
    %135 = vmatpush1.xpose.msra.mxu0 0.0
    %136 = vmatprep.subr.mxu0 0.0
    %137 = vmatpush1.xpose.msra.mxu0 0.0
    %138 = vmatprep.mubr.f32.mxu0 0.0
    %139 = vmatmul.mubr.f32.gmra.mrb[0].mxu0 %v60
    %v140 = vpop.f32.mrb[0].mxu0
    %v141 = vadd.f32 %v41, %v140
    %v142 = vpop.f32.mrb[0].mxu0
    %143 = vmatprep.mubr.f32.mxu0 0.0
    %144 = vmatmul.mubr.f32.gmra.mrb[0].mxu0 %v63
    %v145 = vpop.f32.mrb[0].mxu0
    %v146 = vadd.f32 %v46, %v145
    %v147 = vpop.f32.mrb[0].mxu0
    %148 = vmatprep.mubr.f32.mxu0 0.0
    %149 = vmatmul.mubr.f32.gmra.mrb[0].mxu0 %v66
    %v150 = vpop.f32.mrb[0].mxu0
    %v151 = vadd.f32 %v51, %v150
    %v152 = vpop.f32.mrb[0].mxu0
    %153 = vmatprep.mubr.f32.mxu0 0.0
    %154 = vmatmul.mubr.f32.gmra.mrb[0].mxu0 %v69
    %v155 = vpop.f32.mrb[0].mxu0
    %v156 = vadd.f32 %v56, %v155
    %v157 = vpop.f32.mrb[0].mxu0
    %158 = vdwg.mxu0
    %v159 = vmax.f32 %v141, 0.0
    %v160 = vmax.f32 %v146, 0.0
    %v161 = vmax.f32 %v151, 0.0
    %v162 = vmax.f32 %v156, 0.0
    %v163 = vld [vmem:[%s3] sm:$0xff]
    %v164 = vld [vmem:[%s3 + $0x8] sm:$0xff]
    %v165 = vld [vmem:[%s3 + $0x10] sm:$0xff]
    %v166 = vld [vmem:[%s3 + $0x18] sm:$0xff]
    %v167 = vld [vmem:[%s4] sm:$0xff]
    %v168 = vld [vmem:[%s4 + $0x8] sm:$0xff]
    %v169 = vld [vmem:[%s4 + $0x10] sm:$0xff]
    %v170 = vld [vmem:[%s4 + $0x18] sm:$0xff]
    %172 = vset.pattern.permute.xlu0 0
    %173 = vperm.xlu0 %172, %v167
    %v174 = vpop.permute.xlu0 %173
    %177 = vset.pattern.permute.xlu0 0
    %178 = vperm.xlu0 %177, %v168
    %v179 = vpop.permute.xlu0 %178
    %182 = vset.pattern.permute.xlu0 0
    %183 = vperm.xlu0 %182, %v169
    %v184 = vpop.permute.xlu0 %183
    %187 = vset.pattern.permute.xlu0 0
    %188 = vperm.xlu0 %187, %v170
    %v189 = vpop.permute.xlu0 %188
    %v192 = vsel %vm58, %v163, 0
    %v195 = vsel %vm58, %v164, 0
    %v198 = vsel %vm58, %v165, 0
    %v201 = vsel %vm58, %v166, 0
    %203 = vmatprep.subr.mxu0 0.0
    %204 = vmatpush1.msra.mxu0 %v159
    %205 = vmatprep.subr.mxu0 0.0
    %206 = vmatpush1.msra.mxu0 %v160
    %207 = vmatprep.subr.mxu0 0.0
    %208 = vmatpush1.msra.mxu0 %v161
    %209 = vmatprep.subr.mxu0 0.0
    %210 = vmatpush1.msra.mxu0 %v162
    %211 = vmatprep.subr.mxu0 0.0
    %212 = vmatpush1.msra.mxu0 0.0
    %213 = vmatprep.subr.mxu0 0.0
    %214 = vmatpush1.msra.mxu0 0.0
    %215 = vmatprep.subr.mxu0 0.0
    %216 = vmatpush1.msra.mxu0 0.0
    %217 = vmatprep.subr.mxu0 0.0
    %218 = vmatpush1.msra.mxu0 0.0
    %219 = vmatprep.subr.mxu0 0.0
    %220 = vmatpush1.msra.mxu0 0.0
    %221 = vmatprep.subr.mxu0 0.0
    %222 = vmatpush1.msra.mxu0 0.0
    %223 = vmatprep.subr.mxu0 0.0
    %224 = vmatpush1.msra.mxu0 0.0
    %225 = vmatprep.subr.mxu0 0.0
    %226 = vmatpush1.msra.mxu0 0.0
    %227 = vmatprep.subr.mxu0 0.0
    %228 = vmatpush1.msra.mxu0 0.0
    %229 = vmatprep.subr.mxu0 0.0
    %230 = vmatpush1.msra.mxu0 0.0
    %231 = vmatprep.subr.mxu0 0.0
    %232 = vmatpush1.msra.mxu0 0.0
    %233 = vmatprep.subr.mxu0 0.0
    %234 = vmatpush1.msra.mxu0 0.0
    %235 = vmatprep.subr.mxu0 0.0
    %236 = vmatpush1.msra.mxu0 0.0
    %237 = vmatprep.subr.mxu0 0.0
    %238 = vmatpush1.msra.mxu0 0.0
    %239 = vmatprep.subr.mxu0 0.0
    %240 = vmatpush1.msra.mxu0 0.0
    %241 = vmatprep.subr.mxu0 0.0
    %242 = vmatpush1.msra.mxu0 0.0
    %243 = vmatprep.subr.mxu0 0.0
    %244 = vmatpush1.msra.mxu0 0.0
    %245 = vmatprep.subr.mxu0 0.0
    %246 = vmatpush1.msra.mxu0 0.0
    %247 = vmatprep.subr.mxu0 0.0
    %248 = vmatpush1.msra.mxu0 0.0
    %249 = vmatprep.subr.mxu0 0.0
    %250 = vmatpush1.msra.mxu0 0.0
    %251 = vmatprep.subr.mxu0 0.0
    %252 = vmatpush1.msra.mxu0 0.0
    %253 = vmatprep.subr.mxu0 0.0
    %254 = vmatpush1.msra.mxu0 0.0
    %255 = vmatprep.subr.mxu0 0.0
    %256 = vmatpush1.msra.mxu0 0.0
    %257 = vmatprep.subr.mxu0 0.0
    %258 = vmatpush1.msra.mxu0 0.0
    %259 = vmatprep.subr.mxu0 0.0
    %260 = vmatpush1.msra.mxu0 0.0
    %261 = vmatprep.subr.mxu0 0.0
    %262 = vmatpush1.msra.mxu0 0.0
    %263 = vmatprep.subr.mxu0 0.0
    %264 = vmatpush1.msra.mxu0 0.0
    %265 = vmatprep.subr.mxu0 0.0
    %266 = vmatpush1.msra.mxu0 0.0
    %267 = vmatprep.mubr.f32.mxu0 0.0
    %268 = vmatmul.mubr.f32.gmra.mrb[0].mxu0 %v192
    %v269 = vpop.f32.mrb[0].mxu0
    %v270 = vadd.f32 %v174, %v269
    %v271 = vpop.f32.mrb[0].mxu0
    %272 = vmatprep.mubr.f32.mxu0 0.0
    %273 = vmatmul.mubr.f32.gmra.mrb[0].mxu0 %v195
    %v274 = vpop.f32.mrb[0].mxu0
    %v275 = vadd.f32 %v179, %v274
    %v276 = vpop.f32.mrb[0].mxu0
    %277 = vmatprep.mubr.f32.mxu0 0.0
    %278 = vmatmul.mubr.f32.gmra.mrb[0].mxu0 %v198
    %v279 = vpop.f32.mrb[0].mxu0
    %v280 = vadd.f32 %v184, %v279
    %v281 = vpop.f32.mrb[0].mxu0
    %282 = vmatprep.mubr.f32.mxu0 0.0
    %283 = vmatmul.mubr.f32.gmra.mrb[0].mxu0 %v201
    %v284 = vpop.f32.mrb[0].mxu0
    %v285 = vadd.f32 %v189, %v284
    %v286 = vpop.f32.mrb[0].mxu0
    %287 = vdwg.mxu0
    %v288 = vmax.f32 %v270, 0.0
    %v289 = vmax.f32 %v275, 0.0
    %v290 = vmax.f32 %v280, 0.0
    %v291 = vmax.f32 %v285, 0.0
    %v292 = vld [vmem:[%s5] sm:$0xff]
    %v293 = vld [vmem:[%s5 + $0x8] sm:$0xff]
    %v294 = vld [vmem:[%s5 + $0x10] sm:$0xff]
    %v295 = vld [vmem:[%s5 + $0x18] sm:$0xff]
    %v296 = vld [vmem:[#allocation2] sm:$0x1]
    %298 = vset.pattern.permute.xlu0 0
    %299 = vperm.xlu0 %298, %v292
    %v300 = vpop.permute.xlu0 %299
    %303 = vset.pattern.permute.xlu0 0
    %304 = vperm.xlu0 %303, %v293
    %v305 = vpop.permute.xlu0 %304
    %308 = vset.pattern.permute.xlu0 0
    %309 = vperm.xlu0 %308, %v294
    %v310 = vpop.permute.xlu0 %309
    %313 = vset.pattern.permute.xlu0 0
    %314 = vperm.xlu0 %313, %v295
    %v315 = vpop.permute.xlu0 %314
    %v317 = vmul.f32 %v288, %v300
    %v318 = vmul.f32 %v289, %v305
    %v319 = vmul.f32 %v290, %v310
    %v320 = vmul.f32 %v291, %v315
    %vm321 = vcmask 64512
    %v322 = vsel %vm321, %v317, 0.0
    %v323 = vsel %vm321, %v318, 0.0
    %v324 = vadd.f32 %v322, %v323
    %v325 = vsel %vm321, %v319, 0.0
    %v326 = vadd.f32 %v324, %v325
    %v327 = vsel %vm321, %v320, 0.0
    %v328 = vadd.f32 %v326, %v327
    %v329 = vrot.slane %v328, 4
    %v330 = vadd.f32 %v328, %v329
    %v331 = vrot.slane %v330, 2
    %v332 = vadd.f32 %v330, %v331
    %v333 = vrot.slane %v332, 1
    %v334 = vadd.f32 %v332, %v333
    %336 = vset.pattern.permute.xlu0 0
    %337 = vperm.xlu0 %336, %v296
    %v338 = vpop.permute.xlu0 %337
    %v340 = vlaneseq
    %v341 = vshrl.u32 %v340, 7
    %v342 = vsub.s32 0, %v341
    %v343 = vrot.slane %v338, %v342
    %v344 = vadd.f32 %v334, %v343
    %v345 = vmax.f32 %v344, 0.0
    %vm346 = vcmask 57344
    %347 = vst.msk [vmem:[#allocation3] sm:$0x1] %vm346, %v345
    // Predicated region
    $region30: #{tpu_custom_call.1} parent=1 // pred_check
      _
    $region31: #{tpu_custom_call.1} parent=1 // pred_check_branch
      %349 = sbr.rel (0) target = $region33
    $region32: #{tpu_custom_call.1} parent=1 // pred_region
      %s351 = ssub.s32 16, 16
      %352 = vsyncadd [#allocation4], %s351
      %s354 = sshll.u32 [#allocation3], 4
      %s355 = int_to_ptr.vmem [resolvable:$true] %s354
      %357 = dma.vmem_to_hbm [thread:$0]  %s355, 16, %s7, [#allocation4]
    $region33: #{tpu_custom_call.1} parent=1 // pred_fallthru
      _
    // Predicated region
    $region34: #{tpu_custom_call.1} parent=1 // pred_check
      _
    $region35: #{tpu_custom_call.1} parent=1 // pred_check_branch
      %359 = sbr.rel (0) target = $region37
    $region36: #{tpu_custom_call.1} parent=1 // pred_region
      %360 = dma.done [#allocation4], 16
    $region37: #{tpu_custom_call.1} parent=1 // pred_fallthru
      _
    %361 = vsyncpa [#allocation4], 1

</llo_original>
